<compile_context>
chip_gen: v7x
topology: tpu7x:2x2x1
jax: 0.10.0
libtpu: 0.0.40
codegen_flags: <defaults>
</compile_context>

<pallas_src>
from functools import partial

import jax
import jax.numpy as jnp
from jax.experimental import pallas as pl
from jax.experimental.pallas import tpu as pltpu

VISIBLE_RADIUS = 1
HIDDEN_SIZE = 50
INPUT_SIZE = (VISIBLE_RADIUS * 2 + 1) ** 2 + 1 + 2  # 12
OUTPUT_SIZE = 4 + 1                                  # 5

HIDDEN_PAD = 128   # lane-dense hidden width (50 -> 128, zero padded)
OUT_PAD = 8        # narrow output width (5 -> 8, zero padded); full-dim block, tiny writeback
MAX_TILE_B = 1024  # cap on batch rows per grid step (VMEM footprint stays ~100 KB)


def policy_kernel(x_ref, w1_ref, b1_ref, w2_ref, scores_ref, value_ref):
    # x_ref:      (tile_b, INPUT_SIZE)       f32 observations
    # w1_ref:     (INPUT_SIZE, HIDDEN_PAD)   cols 50..127 are zero
    # b1_ref:     (1, HIDDEN_PAD)            lanes 50..127 are zero
    # w2_ref:     (HIDDEN_PAD, OUT_PAD)      rows 50..127 and cols 5..7 are zero
    # scores_ref: (tile_b, 4)                action scores
    # value_ref:  (tile_b, 1)                state value
    x = jnp.tanh(x_ref[...])
    h = jnp.dot(x, w1_ref[...], preferred_element_type=jnp.float32) + b1_ref[...]
    h = jnp.maximum(h, 0.0)                  # padded lanes: relu(0 + 0) = 0
    o = jnp.dot(h, w2_ref[...], preferred_element_type=jnp.float32)  # (tile_b, 8)
    scores_ref[...] = o[:, :4]
    value_ref[...] = o[:, 4:5]


def pad_params(w1, b1, w2):
    """Zero-pad parameters ONCE (at rest).  Exact: padded lanes/rows contribute zeros."""
    w1p = jnp.zeros((INPUT_SIZE, HIDDEN_PAD), jnp.float32).at[:, :HIDDEN_SIZE].set(
        jnp.asarray(w1, jnp.float32))
    b1p = jnp.zeros((1, HIDDEN_PAD), jnp.float32).at[:, :HIDDEN_SIZE].set(
        jnp.asarray(b1, jnp.float32).reshape(1, -1))
    w2p = jnp.zeros((HIDDEN_PAD, OUT_PAD), jnp.float32).at[:HIDDEN_SIZE, :OUTPUT_SIZE].set(
        jnp.asarray(w2, jnp.float32))
    return w1p, b1p, w2p


def _num_tensorcores() -> int:
    """Best-effort: 2 TensorCores per chip on v7x, 1 on v5e/v6e (safe default: 1)."""
    try:
        kind = jax.devices()[0].device_kind.lower()
    except Exception:
        return 1
    return 2 if ("v7" in kind or "7x" in kind) else 1


def _choose_tile(b: int, n_cores: int) -> int:
    """Rows per grid step: ~ceil(B / n_cores), rounded up to a multiple of 8, capped."""
    per_core = -(-b // n_cores)
    tile = min(per_core, MAX_TILE_B)
    tile = -(-tile // 8) * 8
    return max(tile, 8)


@partial(jax.jit, static_argnames=("tile_b", "n_tiles", "core_parallel"))
def _policy_call(xb, w1p, b1p, w2p, *, tile_b, n_tiles, core_parallel):
    b = xb.shape[0]
    if core_parallel:
        # Only core_parallel semantics shard a grid axis across v7x's two TCs.
        sem = (pltpu.CORE_PARALLEL,)
    else:
        sem = ("parallel",)
    return pl.pallas_call(
        policy_kernel,
        out_shape=(jax.ShapeDtypeStruct((b, 4), jnp.float32),
                   jax.ShapeDtypeStruct((b, 1), jnp.float32)),
        grid_spec=pltpu.PrefetchScalarGridSpec(
            num_scalar_prefetch=0,
            grid=(n_tiles,),
            in_specs=[
                pl.BlockSpec((tile_b, INPUT_SIZE), lambda i: (i, 0)),
                # Constant index_map -> weights stay resident in VMEM across steps.
                pl.BlockSpec((INPUT_SIZE, HIDDEN_PAD), lambda i: (0, 0)),
                pl.BlockSpec((1, HIDDEN_PAD), lambda i: (0, 0)),
                pl.BlockSpec((HIDDEN_PAD, OUT_PAD), lambda i: (0, 0)),
            ],
            out_specs=[
                pl.BlockSpec((tile_b, 4), lambda i: (i, 0)),
                pl.BlockSpec((tile_b, 1), lambda i: (i, 0)),
            ],
        ),
        compiler_params=pltpu.CompilerParams(dimension_semantics=sem),
    )(xb, w1p, b1p, w2p)


def policy_forward(x, w1p, b1p, w2p):
    """Batched Policy forward with pre-padded params (see pad_params).

    x: anything reshapeable to (B, INPUT_SIZE) — a single observation (mirrors the
       PyTorch x.view(1, -1)) or a batch of observations / rollout timesteps.
    Returns (scores: (B, 4), value: (B,)).
    """
    xb = jnp.asarray(x, jnp.float32).reshape(-1, INPUT_SIZE)
    b = xb.shape[0]
    n_cores = _num_tensorcores()
    tile_b = _choose_tile(b, n_cores)
    n_tiles = -(-b // tile_b)
    core_parallel = (n_cores > 1) and (n_tiles > 1)
    scores, value = _policy_call(xb, w1p, b1p, w2p,
                                 tile_b=tile_b, n_tiles=n_tiles,
                                 core_parallel=core_parallel)
    return scores, value.reshape(-1)


def policy_forward_ref(x, w1, b1, w2):
    """Pure-JAX reference with unpadded parameters."""
    xb = jnp.asarray(x, jnp.float32).reshape(-1, INPUT_SIZE)
    h = jnp.maximum(jnp.tanh(xb) @ w1 + jnp.asarray(b1).reshape(1, -1), 0.0)
    o = h @ w2
    return o[:, :4], o[:, 4]


if __name__ == "__main__":
    key = jax.random.PRNGKey(0)
    k_x, k_xs, k_w1, k_b1, k_w2 = jax.random.split(key, 5)

    # Deterministic parameter init (shapes from Policy.__init__; synthetic values).
    w1 = (jax.random.normal(k_w1, (INPUT_SIZE, HIDDEN_SIZE), jnp.float32)
          * (1.0 / jnp.sqrt(INPUT_SIZE)))
    b1 = (jax.random.normal(k_b1, (1, HIDDEN_SIZE), jnp.float32)
          * (1.0 / jnp.sqrt(INPUT_SIZE)))
    w2 = (jax.random.normal(k_w2, (HIDDEN_SIZE, OUTPUT_SIZE), jnp.float32)
          * (1.0 / jnp.sqrt(HIDDEN_SIZE)))

    # Pad params once (at rest); padded lanes/rows are exactly zero.
    w1p, b1p, w2p = pad_params(w1, b1, w2)

    # Small batch of observations (e.g. 32 rollout steps of 12 features each).
    xb = jax.random.normal(k_x, (32, INPUT_SIZE), jnp.float32)
    scores_b, value_b = policy_forward(xb, w1p, b1p, w2p)
    jax.block_until_ready((scores_b, value_b))

    scores_b_ref, value_b_ref = policy_forward_ref(xb, w1, b1, w2)
    assert scores_b.shape == (32, 4) and value_b.shape == (32,)
    assert jnp.allclose(scores_b, scores_b_ref, atol=1e-4, rtol=1e-4)
    assert jnp.allclose(value_b, value_b_ref, atol=1e-4, rtol=1e-4)

    # Single-observation path (mirrors the original PyTorch x.view(1, -1)).
    xs = jax.random.normal(k_xs, (INPUT_SIZE,), jnp.float32)
    scores_s, value_s = policy_forward(xs, w1p, b1p, w2p)
    jax.block_until_ready((scores_s, value_s))
    scores_s_ref, value_s_ref = policy_forward_ref(xs, w1, b1, w2)
    assert scores_s.shape == (1, 4) and value_s.shape == (1,)
    assert jnp.allclose(scores_s, scores_s_ref, atol=1e-4, rtol=1e-4)
    assert jnp.allclose(value_s, value_s_ref, atol=1e-4, rtol=1e-4)

    print("KERNEL_OK")
</pallas_src>

<mosaic_0001>
module attributes {stable_mosaic.version = 11 : i64} {
  func.func @policy_kernel(%arg0: i32, %arg1: memref<32x12xf32, #tpu.memory_space<vmem>>, %arg2: memref<12x128xf32, #tpu.memory_space<vmem>>, %arg3: memref<1x128xf32, #tpu.memory_space<vmem>>, %arg4: memref<128x8xf32, #tpu.memory_space<vmem>>, %arg5: memref<32x4xf32, #tpu.memory_space<vmem>>, %arg6: memref<32x1xf32, #tpu.memory_space<vmem>>) attributes {dimension_semantics = [#tpu.dimension_semantics<parallel>], iteration_bounds = array<i64: 1>, scalar_prefetch = 0 : i64, scratch_operands = 0 : i64, tpu.core_type = #tpu.core_type<tc>, window_params = [{transform_indices = @transform_0, window_bounds = array<i64: 32, 12>}, {pipeline_mode = #tpu.pipeline_mode<synchronous>, transform_indices = @transform_1, window_bounds = array<i64: 12, 128>}, {pipeline_mode = #tpu.pipeline_mode<synchronous>, transform_indices = @transform_2, window_bounds = array<i64: 1, 128>}, {pipeline_mode = #tpu.pipeline_mode<synchronous>, transform_indices = @transform_3, window_bounds = array<i64: 128, 8>}, {transform_indices = @transform_4, window_bounds = array<i64: 32, 4>}, {transform_indices = @transform_5, window_bounds = array<i64: 32, 1>}]} {
    %c0 = arith.constant 0 : index
    %c0_0 = arith.constant 0 : index
    %0 = vector.load %arg1[%c0, %c0_0] : memref<32x12xf32, #tpu.memory_space<vmem>>, vector<32x12xf32>
    %1 = math.tanh %0 : vector<32x12xf32>
    %c0_1 = arith.constant 0 : index
    %c0_2 = arith.constant 0 : index
    %2 = vector.load %arg2[%c0_1, %c0_2] : memref<12x128xf32, #tpu.memory_space<vmem>>, vector<12x128xf32>
    %cst = arith.constant dense<0.000000e+00> : vector<32x128xf32>
    %3 = tpu.matmul %1, %2, %cst {dimension_numbers = #tpu.dot_dimension_numbers<[1], [0], [0], [1], [0, 0, 1, 1], [], []>} : vector<32x12xf32>, vector<12x128xf32>, vector<32x128xf32> -> vector<32x128xf32>
    %c0_3 = arith.constant 0 : index
    %c0_4 = arith.constant 0 : index
    %4 = vector.load %arg3[%c0_3, %c0_4] : memref<1x128xf32, #tpu.memory_space<vmem>>, vector<1x128xf32>
    %5 = vector.broadcast %4 : vector<1x128xf32> to vector<32x128xf32>
    %6 = arith.addf %3, %5 : vector<32x128xf32>
    %cst_5 = arith.constant 0.000000e+00 : f32
    %7 = vector.broadcast %cst_5 : f32 to vector<32x128xf32>
    %8 = arith.maximumf %6, %7 : vector<32x128xf32>
    %c0_6 = arith.constant 0 : index
    %c0_7 = arith.constant 0 : index
    %9 = vector.load %arg4[%c0_6, %c0_7] : memref<128x8xf32, #tpu.memory_space<vmem>>, vector<128x8xf32>
    %cst_8 = arith.constant dense<0.000000e+00> : vector<32x8xf32>
    %10 = tpu.matmul %8, %9, %cst_8 {dimension_numbers = #tpu.dot_dimension_numbers<[1], [0], [0], [1], [0, 0, 1, 1], [], []>} : vector<32x128xf32>, vector<128x8xf32>, vector<32x8xf32> -> vector<32x8xf32>
    %11 = vector.extract_strided_slice %10 {offsets = [0, 0], sizes = [32, 4], strides = [1, 1]} : vector<32x8xf32> to vector<32x4xf32>
    %c0_9 = arith.constant 0 : index
    %c0_10 = arith.constant 0 : index
    %12 = vector.load %arg5[%c0_9, %c0_10] : memref<32x4xf32, #tpu.memory_space<vmem>>, vector<32x4xf32>
    tpu.vector_store %arg5[%c0_9, %c0_10], %11 {strides = array<i32>} : memref<32x4xf32, #tpu.memory_space<vmem>>, vector<32x4xf32>,
    %13 = vector.extract_strided_slice %10 {offsets = [0, 4], sizes = [32, 1], strides = [1, 1]} : vector<32x8xf32> to vector<32x1xf32>
    %c0_11 = arith.constant 0 : index
    %c0_12 = arith.constant 0 : index
    %14 = vector.load %arg6[%c0_11, %c0_12] : memref<32x1xf32, #tpu.memory_space<vmem>>, vector<32x1xf32>
    tpu.vector_store %arg6[%c0_11, %c0_12], %13 {strides = array<i32>} : memref<32x1xf32, #tpu.memory_space<vmem>>, vector<32x1xf32>,
    return
  }
  func.func @transform_0(%arg0: i32) -> (i32, i32) {
    %c0_i32 = arith.constant 0 : i32
    %c0_i32_0 = arith.constant 0 : i32
    return %arg0, %c0_i32 : i32, i32
  }
  func.func @transform_1(%arg0: i32) -> (i32, i32) {
    %c0_i32 = arith.constant 0 : i32
    %c0_i32_0 = arith.constant 0 : i32
    %c0_i32_1 = arith.constant 0 : i32
    return %c0_i32, %c0_i32_0 : i32, i32
  }
  func.func @transform_2(%arg0: i32) -> (i32, i32) {
    %c0_i32 = arith.constant 0 : i32
    %c0_i32_0 = arith.constant 0 : i32
    %c0_i32_1 = arith.constant 0 : i32
    return %c0_i32, %c0_i32_0 : i32, i32
  }
  func.func @transform_3(%arg0: i32) -> (i32, i32) {
    %c0_i32 = arith.constant 0 : i32
    %c0_i32_0 = arith.constant 0 : i32
    %c0_i32_1 = arith.constant 0 : i32
    return %c0_i32, %c0_i32_0 : i32, i32
  }
  func.func @transform_4(%arg0: i32) -> (i32, i32) {
    %c0_i32 = arith.constant 0 : i32
    %c0_i32_0 = arith.constant 0 : i32
    return %arg0, %c0_i32 : i32, i32
  }
  func.func @transform_5(%arg0: i32) -> (i32, i32) {
    %c0_i32 = arith.constant 0 : i32
    %c0_i32_0 = arith.constant 0 : i32
    return %arg0, %c0_i32 : i32, i32
  }
}

</mosaic_0001>

<llo_original>
// kernel: _policy_call.1
$region0: #{_policy_call.1}
  #allocation0 [shape = 'u32[]', space=smem, size = 0x4, offset = 0x4, fixed_abs, tag = 'smem constant byte address 0x4 - core index']
  #allocation1 [shape = 'u32[144,128]{1,0:T(1,128)}', space=vmem, size = 0x12000, scoped, tag = 'internal scratch']
  %s0 = inlined_call_operand.vmem [shape: f32[32,12], index: 0, kind: input, shape index: {}]
  %s1 = inlined_call_operand.vmem [shape: f32[12,128], index: 1, kind: input, shape index: {}]
  %s2 = inlined_call_operand.vmem [shape: f32[1,128], index: 2, kind: input, shape index: {}]
  %s3 = inlined_call_operand.vmem [shape: f32[128,8], index: 3, kind: input, shape index: {}]
  %s4 = inlined_call_operand.vmem [shape: f32[32,4], index: 4, kind: output, shape index: {0}]
  %s5 = inlined_call_operand.vmem [shape: f32[32,1], index: 5, kind: output, shape index: {1}]
  %6 = xla_tuple %s4, %s5
  %s7 = sld [smem:[#allocation0]]
  $region34: #{_policy_call.1} parent=0
    _
  %s9 = ssub.s32 1, %s7
  %s10 = scalar_select 0, %s9, %s7
  // Predicated region
  $region2: #{_policy_call.1} parent=0 // pred_check
    _
  $region3: #{_policy_call.1} parent=0 // pred_check_branch
    %12 = sbr.rel (0) target = $region5
  $region4: #{_policy_call.1} parent=0 // pred_region
    _
  $region5: #{_policy_call.1} parent=0 // pred_fallthru
    _
  // Predicated region
  $region6: #{_policy_call.1} parent=0 // pred_check
    _
  $region7: #{_policy_call.1} parent=0 // pred_check_branch
    %14 = sbr.rel (0) target = $region9
  $region8: #{_policy_call.1} parent=0 // pred_region
    _
  $region9: #{_policy_call.1} parent=0 // pred_fallthru
    _
  // Predicated region
  $region10: #{_policy_call.1} parent=0 // pred_check
    _
  $region11: #{_policy_call.1} parent=0 // pred_check_branch
    %16 = sbr.rel (0) target = $region13
  $region12: #{_policy_call.1} parent=0 // pred_region
    _
  $region13: #{_policy_call.1} parent=0 // pred_fallthru
    _
  // Predicated region
  $region14: #{_policy_call.1} parent=0 // pred_check
    _
  $region15: #{_policy_call.1} parent=0 // pred_check_branch
    %18 = sbr.rel (0) target = $region17
  $region16: #{_policy_call.1} parent=0 // pred_region
    _
  $region17: #{_policy_call.1} parent=0 // pred_fallthru
    _
  %v19 = vld [vmem:[%s0] sm:$0xff]
  %v20 = vld [vmem:[%s0 + $0x8] sm:$0xff]
  %v21 = vld [vmem:[%s0 + $0x10] sm:$0xff]
  %v22 = vld [vmem:[%s0 + $0x18] sm:$0xff]
  %v23 = vtanh.pop %v19
  %v24 = vtanh.pop %v20
  %v25 = vtanh.pop %v21
  %v26 = vtanh.pop %v22
  %v27 = vld [vmem:[%s1] sm:$0xff]
  %v28 = vld [vmem:[%s1 + $0x8] sm:$0xf]
  %v29 = vld [vmem:[%s2] sm:$0x1]
  %v31 = vlaneseq
  %v32 = vshrl.u32 %v31, 7
  %v33 = vsub.s32 0, %v32
  %v34 = vrot.slane %v29, %v33
  %vm36 = vcmask 97280
  %v38 = vsel %vm36, %v23, 0
  %v41 = vsel %vm36, %v24, 0
  %v44 = vsel %vm36, %v25, 0
  %v47 = vsel %vm36, %v26, 0
  %vm49 = vcmask 1043456
  %v51 = vsel %vm49, %v28, 0
  %53 = vmatprep.subr.mxu0 0.0
  %54 = vmatpush1.msra.mxu0 %v27
  %55 = vmatprep.subr.mxu0 0.0
  %56 = vmatpush1.msra.mxu0 %v51
  %57 = vmatprep.subr.mxu0 0.0
  %58 = vmatpush1.msra.mxu0 0.0
  %59 = vmatprep.subr.mxu0 0.0
  %60 = vmatpush1.msra.mxu0 0.0
  %61 = vmatprep.subr.mxu0 0.0
  %62 = vmatpush1.msra.mxu0 0.0
  %63 = vmatprep.subr.mxu0 0.0
  %64 = vmatpush1.msra.mxu0 0.0
  %65 = vmatprep.subr.mxu0 0.0
  %66 = vmatpush1.msra.mxu0 0.0
  %67 = vmatprep.subr.mxu0 0.0
  %68 = vmatpush1.msra.mxu0 0.0
  %69 = vmatprep.subr.mxu0 0.0
  %70 = vmatpush1.msra.mxu0 0.0
  %71 = vmatprep.subr.mxu0 0.0
  %72 = vmatpush1.msra.mxu0 0.0
  %73 = vmatprep.subr.mxu0 0.0
  %74 = vmatpush1.msra.mxu0 0.0
  %75 = vmatprep.subr.mxu0 0.0
  %76 = vmatpush1.msra.mxu0 0.0
  %77 = vmatprep.subr.mxu0 0.0
  %78 = vmatpush1.msra.mxu0 0.0
  %79 = vmatprep.subr.mxu0 0.0
  %80 = vmatpush1.msra.mxu0 0.0
  %81 = vmatprep.subr.mxu0 0.0
  %82 = vmatpush1.msra.mxu0 0.0
  %83 = vmatprep.subr.mxu0 0.0
  %84 = vmatpush1.msra.mxu0 0.0
  %85 = vmatprep.subr.mxu0 0.0
  %86 = vmatpush1.msra.mxu0 0.0
  %87 = vmatprep.subr.mxu0 0.0
  %88 = vmatpush1.msra.mxu0 0.0
  %89 = vmatprep.subr.mxu0 0.0
  %90 = vmatpush1.msra.mxu0 0.0
  %91 = vmatprep.subr.mxu0 0.0
  %92 = vmatpush1.msra.mxu0 0.0
  %93 = vmatprep.subr.mxu0 0.0
  %94 = vmatpush1.msra.mxu0 0.0
  %95 = vmatprep.subr.mxu0 0.0
  %96 = vmatpush1.msra.mxu0 0.0
  %97 = vmatprep.subr.mxu0 0.0
  %98 = vmatpush1.msra.mxu0 0.0
  %99 = vmatprep.subr.mxu0 0.0
  %100 = vmatpush1.msra.mxu0 0.0
  %101 = vmatprep.subr.mxu0 0.0
  %102 = vmatpush1.msra.mxu0 0.0
  %103 = vmatprep.subr.mxu0 0.0
  %104 = vmatpush1.msra.mxu0 0.0
  %105 = vmatprep.subr.mxu0 0.0
  %106 = vmatpush1.msra.mxu0 0.0
  %107 = vmatprep.subr.mxu0 0.0
  %108 = vmatpush1.msra.mxu0 0.0
  %109 = vmatprep.subr.mxu0 0.0
  %110 = vmatpush1.msra.mxu0 0.0
  %111 = vmatprep.subr.mxu0 0.0
  %112 = vmatpush1.msra.mxu0 0.0
  %113 = vmatprep.subr.mxu0 0.0
  %114 = vmatpush1.msra.mxu0 0.0
  %115 = vmatprep.subr.mxu0 0.0
  %116 = vmatpush1.msra.mxu0 0.0
  %117 = vmatprep.mubr.f32.mxu0 0.0
  %118 = vmatmul.mubr.f32.gmra.mrb[0].mxu0 %v38
  %v119 = vpop.f32.mrb[0].mxu0
  %v120 = vadd.f32 %v34, %v119
  %v121 = vpop.f32.mrb[0].mxu0
  %122 = vmatprep.mubr.f32.mxu0 0.0
  %123 = vmatmul.mubr.f32.gmra.mrb[0].mxu0 %v41
  %v124 = vpop.f32.mrb[0].mxu0
  %v125 = vadd.f32 %v34, %v124
  %v126 = vpop.f32.mrb[0].mxu0
  %127 = vmatprep.mubr.f32.mxu0 0.0
  %128 = vmatmul.mubr.f32.gmra.mrb[0].mxu0 %v44
  %v129 = vpop.f32.mrb[0].mxu0
  %v130 = vadd.f32 %v34, %v129
  %v131 = vpop.f32.mrb[0].mxu0
  %132 = vmatprep.mubr.f32.mxu0 0.0
  %133 = vmatmul.mubr.f32.gmra.mrb[0].mxu0 %v47
  %v134 = vpop.f32.mrb[0].mxu0
  %v135 = vadd.f32 %v34, %v134
  %v136 = vpop.f32.mrb[0].mxu0
  %137 = vdwg.mxu0
  %v138 = vmax.f32 %v120, 0.0
  %v139 = vmax.f32 %v125, 0.0
  %v140 = vmax.f32 %v130, 0.0
  %v141 = vmax.f32 %v135, 0.0
  %v142 = vld [vmem:[%s3] sm:$0xff]
  %v143 = vld [vmem:[%s3 + $0x8] sm:$0xff]
  %v144 = vld [vmem:[%s3 + $0x10] sm:$0xff]
  %v145 = vld [vmem:[%s3 + $0x18] sm:$0xff]
  %v146 = vld [vmem:[%s3 + $0x20] sm:$0xff]
  %v147 = vld [vmem:[%s3 + $0x28] sm:$0xff]
  %v148 = vld [vmem:[%s3 + $0x30] sm:$0xff]
  %v149 = vld [vmem:[%s3 + $0x38] sm:$0xff]
  %v150 = vld [vmem:[%s3 + $0x40] sm:$0xff]
  %v151 = vld [vmem:[%s3 + $0x48] sm:$0xff]
  %v152 = vld [vmem:[%s3 + $0x50] sm:$0xff]
  %v153 = vld [vmem:[%s3 + $0x58] sm:$0xff]
  %v154 = vld [vmem:[%s3 + $0x60] sm:$0xff]
  %v155 = vld [vmem:[%s3 + $0x68] sm:$0xff]
  %v156 = vld [vmem:[%s3 + $0x70] sm:$0xff]
  %v157 = vld [vmem:[%s3 + $0x78] sm:$0xff]
  %158 = vmatprep.subr.mxu0 0.0
  %159 = vmatpush1.msra.mxu0 %v142
  %160 = vmatprep.subr.mxu0 0.0
  %161 = vmatpush1.msra.mxu0 %v143
  %162 = vmatprep.subr.mxu0 0.0
  %163 = vmatpush1.msra.mxu0 %v144
  %164 = vmatprep.subr.mxu0 0.0
  %165 = vmatpush1.msra.mxu0 %v145
  %166 = vmatprep.subr.mxu0 0.0
  %167 = vmatpush1.msra.mxu0 %v146
  %168 = vmatprep.subr.mxu0 0.0
  %169 = vmatpush1.msra.mxu0 %v147
  %170 = vmatprep.subr.mxu0 0.0
  %171 = vmatpush1.msra.mxu0 %v148
  %172 = vmatprep.subr.mxu0 0.0
  %173 = vmatpush1.msra.mxu0 %v149
  %174 = vmatprep.subr.mxu0 0.0
  %175 = vmatpush1.msra.mxu0 %v150
  %176 = vmatprep.subr.mxu0 0.0
  %177 = vmatpush1.msra.mxu0 %v151
  %178 = vmatprep.subr.mxu0 0.0
  %179 = vmatpush1.msra.mxu0 %v152
  %180 = vmatprep.subr.mxu0 0.0
  %181 = vmatpush1.msra.mxu0 %v153
  %182 = vmatprep.subr.mxu0 0.0
  %183 = vmatpush1.msra.mxu0 %v154
  %184 = vmatprep.subr.mxu0 0.0
  %185 = vmatpush1.msra.mxu0 %v155
  %186 = vmatprep.subr.mxu0 0.0
  %187 = vmatpush1.msra.mxu0 %v156
  %188 = vmatprep.subr.mxu0 0.0
  %189 = vmatpush1.msra.mxu0 %v157
  %190 = vmatprep.subr.mxu0 0.0
  %191 = vmatpush1.msra.mxu0 0.0
  %192 = vmatprep.subr.mxu0 0.0
  %193 = vmatpush1.msra.mxu0 0.0
  %194 = vmatprep.subr.mxu0 0.0
  %195 = vmatpush1.msra.mxu0 0.0
  %196 = vmatprep.subr.mxu0 0.0
  %197 = vmatpush1.msra.mxu0 0.0
  %198 = vmatprep.subr.mxu0 0.0
  %199 = vmatpush1.msra.mxu0 0.0
  %200 = vmatprep.subr.mxu0 0.0
  %201 = vmatpush1.msra.mxu0 0.0
  %202 = vmatprep.subr.mxu0 0.0
  %203 = vmatpush1.msra.mxu0 0.0
  %204 = vmatprep.subr.mxu0 0.0
  %205 = vmatpush1.msra.mxu0 0.0
  %206 = vmatprep.subr.mxu0 0.0
  %207 = vmatpush1.msra.mxu0 0.0
  %208 = vmatprep.subr.mxu0 0.0
  %209 = vmatpush1.msra.mxu0 0.0
  %210 = vmatprep.subr.mxu0 0.0
  %211 = vmatpush1.msra.mxu0 0.0
  %212 = vmatprep.subr.mxu0 0.0
  %213 = vmatpush1.msra.mxu0 0.0
  %214 = vmatprep.subr.mxu0 0.0
  %215 = vmatpush1.msra.mxu0 0.0
  %216 = vmatprep.subr.mxu0 0.0
  %217 = vmatpush1.msra.mxu0 0.0
  %218 = vmatprep.subr.mxu0 0.0
  %219 = vmatpush1.msra.mxu0 0.0
  %220 = vmatprep.subr.mxu0 0.0
  %221 = vmatpush1.msra.mxu0 0.0
  %222 = vmatprep.mubr.f32.mxu0 0.0
  %223 = vmatmul.mubr.f32.gmra.mrb[0].mxu0 %v138
  %v224 = vpop.f32.mrb[0].mxu0
  %v225 = vadd.f32 0.0, %v224
  %v226 = vpop.f32.mrb[0].mxu0
  %227 = vmatprep.mubr.f32.mxu0 0.0
  %228 = vmatmul.mubr.f32.gmra.mrb[0].mxu0 %v139
  %v229 = vpop.f32.mrb[0].mxu0
  %v230 = vadd.f32 0.0, %v229
  %v231 = vpop.f32.mrb[0].mxu0
  %232 = vmatprep.mubr.f32.mxu0 0.0
  %233 = vmatmul.mubr.f32.gmra.mrb[0].mxu0 %v140
  %v234 = vpop.f32.mrb[0].mxu0
  %v235 = vadd.f32 0.0, %v234
  %v236 = vpop.f32.mrb[0].mxu0
  %237 = vmatprep.mubr.f32.mxu0 0.0
  %238 = vmatmul.mubr.f32.gmra.mrb[0].mxu0 %v141
  %v239 = vpop.f32.mrb[0].mxu0
  %v240 = vadd.f32 0.0, %v239
  %v241 = vpop.f32.mrb[0].mxu0
  %242 = vdwg.mxu0
  %vm243 = vcmask 31744
  %244 = vst.msk [vmem:[%s4] sm:$0xff] %vm243, %v225
  %245 = vst.msk [vmem:[%s4 + $0x8] sm:$0xff] %vm243, %v230
  %246 = vst.msk [vmem:[%s4 + $0x10] sm:$0xff] %vm243, %v235
  %247 = vst.msk [vmem:[%s4 + $0x18] sm:$0xff] %vm243, %v240
  %252 = vrot.lane.b32.xlu0 %v225, 124
  %v253 = vpop.permute.xlu0 %252
  %254 = vrot.lane.b32.xlu0 %v230, 124
  %v255 = vpop.permute.xlu0 %254
  %256 = vrot.lane.b32.xlu0 %v235, 124
  %v257 = vpop.permute.xlu0 %256
  %258 = vrot.lane.b32.xlu0 %v240, 124
  %v259 = vpop.permute.xlu0 %258
  %vm264 = vcmask 7168
  %265 = vst.msk [vmem:[%s5] sm:$0xff] %vm264, %v253
  %266 = vst.msk [vmem:[%s5 + $0x8] sm:$0xff] %vm264, %v255
  %267 = vst.msk [vmem:[%s5 + $0x10] sm:$0xff] %vm264, %v257
  %268 = vst.msk [vmem:[%s5 + $0x18] sm:$0xff] %vm264, %v259
  // Predicated region
  $region18: #{_policy_call.1} parent=0 // pred_check
    _
  $region19: #{_policy_call.1} parent=0 // pred_check_branch
    %270 = sbr.rel (0) target = $region21
  $region20: #{_policy_call.1} parent=0 // pred_region
    _
  $region21: #{_policy_call.1} parent=0 // pred_fallthru
    _
  // Predicated region
  $region22: #{_policy_call.1} parent=0 // pred_check
    _
  $region23: #{_policy_call.1} parent=0 // pred_check_branch
    %272 = sbr.rel (0) target = $region25
  $region24: #{_policy_call.1} parent=0 // pred_region
    _
  $region25: #{_policy_call.1} parent=0 // pred_fallthru
    _
  // Predicated region
  $region26: #{_policy_call.1} parent=0 // pred_check
    _
  $region27: #{_policy_call.1} parent=0 // pred_check_branch
    %274 = sbr.rel (0) target = $region29
  $region28: #{_policy_call.1} parent=0 // pred_region
    _
  $region29: #{_policy_call.1} parent=0 // pred_fallthru
    _
  // Predicated region
  $region30: #{_policy_call.1} parent=0 // pred_check
    _
  $region31: #{_policy_call.1} parent=0 // pred_check_branch
    %276 = sbr.rel (0) target = $region33
  $region32: #{_policy_call.1} parent=0 // pred_region
    _
  $region33: #{_policy_call.1} parent=0 // pred_fallthru
    _

</llo_original>
